<compile_context>
chip_gen: v7x
topology: tpu7x:2x2x1
jax: 0.10.0
libtpu: 0.0.40
codegen_flags: <defaults>
</compile_context>

<pallas_src>
import jax
import jax.numpy as jnp
from jax.experimental import pallas as pl
from jax.experimental.pallas import tpu as pltpu


# ----------------------------- kernel bodies ------------------------------ #

def _band_dropout_col_kernel(x_ref, m_ref, o_ref):
    # x_ref/o_ref: (TM, TN) tile; m_ref: (TM, 1) per-row 0/1 multiplier.
    # (TM, 1) broadcasts along lanes on the VPU for free.
    o_ref[...] = x_ref[...] * m_ref[...]


def _band_dropout_row_kernel(x_ref, d_ref, b_ref, o_ref):
    # x_ref/o_ref: (TM, TN) tile; d_ref: (TM, 1) per-sample drop flag (0/1);
    # b_ref: (1, TN) per-element band mask (0/1, constant within each band).
    d = d_ref[...]
    o_ref[...] = x_ref[...] * (d * b_ref[...] + (1 - d))


# ----------------------------- tiling helpers ------------------------------ #

def _min_sublane(itemsize):
    # Minimum sublane multiple by dtype packing (f32: 8, bf16: 16, int8/fp8: 32).
    return {4: 8, 2: 16, 1: 32}.get(itemsize, 8)


def _target_block_bytes():
    """Generation-aware block-size target for this HBM-streaming op."""
    vmem = 128 << 20
    try:
        info = pltpu.get_tpu_info()
        vmem = int(getattr(info, "vmem_capacity_bytes", vmem))
    except Exception:
        pass
    # v7x (64 MiB VMEM, ~3.2 TB/s HBM): 8 MiB blocks to amortize the ~0.35 us
    # per-grid-step cost. v5e/v6e (128 MiB VMEM, 0.8-1.4 TB/s): 4 MiB is enough.
    return (8 << 20) if vmem <= (64 << 20) else (4 << 20)


def _choose_tiles(R, L, itemsize, target_bytes):
    """Pick (TM, TN) satisfying the (8,128)/full-extent block constraint."""
    min_rows = _min_sublane(itemsize)
    full_width_slab = min_rows * L * itemsize
    if L % 128 != 0 or full_width_slab <= target_bytes:
        # Full lane extent: one contiguous DMA per row slab, maximally dense
        # stores (always legal; mandatory when L isn't a 128 multiple).
        TN = L
    else:
        TN = max(128, (target_bytes // (min_rows * itemsize)) // 128 * 128)
        TN = min(TN, L)
    rows = max(min_rows, target_bytes // max(1, TN * itemsize))
    if rows >= R:
        return R, TN                         # full row extent (always legal)
    return (rows // min_rows) * min_rows, TN  # dtype-aligned; ragged tail OK


def _vmem_limit(TM, TN, itemsize):
    # 2 double-buffered (TM,TN) tiles (in + out) + mask buffers + slack.
    tile = TM * TN * itemsize
    return int(min(2 * 2 * tile + (8 << 20), 112 << 20))


# ------------------------------- forward ---------------------------------- #

def band_dropout_forward(x, key, p=0.2, drop_prob=0.5, training=True,
                         donate=False):
    """x: (B, C, H, W). Returns same-shape array with band dropout applied."""
    if not training:
        return x

    B, C, H, W = x.shape
    L_hw = H * W
    L_chw = C * H * W

    k_drop, k_band = jax.random.split(key)
    # Same mask math as the PyTorch module.
    drop_mask = jax.random.uniform(k_drop, (B, 1, 1, 1)) < drop_prob
    band_mask = (jax.random.uniform(k_band, (C, 1, 1)) > p).astype(jnp.float32)

    itemsize = jnp.dtype(x.dtype).itemsize
    target_bytes = _target_block_bytes()
    io_alias = {0: 0} if donate else {}

    # TODO(synk): on v7x, evaluate pltpu.CORE_PARALLEL on the row grid axis so
    # the grid reliably shards across both TensorCores (plain "parallel" may not).
    dim_sem = ("parallel", "parallel")

    if L_hw % 128 == 0 or L_chw % 128 != 0:
        # (B*C, H*W) layout: per-(b,c) 0/1 multiplier column, lane-dense when
        # H*W is a 128 multiple; otherwise full-extent fallback (still correct).
        R, L = B * C, L_hw
        mult = drop_mask * band_mask + (~drop_mask)              # (B,C,1,1) f32
        mult_col = mult.reshape(R, 1).astype(x.dtype)            # exact 0/1
        x2d = x.reshape(R, L)
        TM, TN = _choose_tiles(R, L, itemsize, target_bytes)
        grid = (pl.cdiv(R, TM), pl.cdiv(L, TN))
        out2d = pl.pallas_call(
            _band_dropout_col_kernel,
            out_shape=jax.ShapeDtypeStruct((R, L), x.dtype),
            grid=grid,
            in_specs=[
                pl.BlockSpec((TM, TN), lambda i, j: (i, j)),   # x tile
                pl.BlockSpec((TM, 1), lambda i, j: (i, 0)),    # multiplier col
            ],
            out_specs=pl.BlockSpec((TM, TN), lambda i, j: (i, j)),
            compiler_params=pltpu.CompilerParams(
                dimension_semantics=dim_sem,
                vmem_limit_bytes=_vmem_limit(TM, TN, itemsize)),
            cost_estimate=pl.CostEstimate(
                flops=R * L, transcendentals=0,
                bytes_accessed=2 * R * L * itemsize + R * itemsize),
            input_output_aliases=io_alias,
        )(x2d, mult_col)
        return out2d.reshape(B, C, H, W)

    # Lane-dense path for H*W not a 128 multiple but C*H*W a 128 multiple
    # (e.g. 7x7 maps with 128/256 channels): (B, C*H*W) layout.
    R, L = B, L_chw
    drop_col = drop_mask.reshape(B, 1).astype(x.dtype)           # (B,1) 0/1
    band_row = (jnp.broadcast_to(band_mask.reshape(C, 1), (C, L_hw))
                .reshape(1, L).astype(x.dtype))                  # (1, C*H*W)
    x2d = x.reshape(R, L)
    TM, TN = _choose_tiles(R, L, itemsize, target_bytes)
    grid = (pl.cdiv(R, TM), pl.cdiv(L, TN))
    out2d = pl.pallas_call(
        _band_dropout_row_kernel,
        out_shape=jax.ShapeDtypeStruct((R, L), x.dtype),
        grid=grid,
        in_specs=[
            pl.BlockSpec((TM, TN), lambda i, j: (i, j)),       # x tile
            pl.BlockSpec((TM, 1), lambda i, j: (i, 0)),        # drop-flag col
            pl.BlockSpec((1, TN), lambda i, j: (0, j)),        # band-mask row
        ],
        out_specs=pl.BlockSpec((TM, TN), lambda i, j: (i, j)),
        compiler_params=pltpu.CompilerParams(
            dimension_semantics=dim_sem,
            vmem_limit_bytes=_vmem_limit(TM, TN, itemsize)),
        cost_estimate=pl.CostEstimate(
            flops=3 * R * L, transcendentals=0,
            bytes_accessed=2 * R * L * itemsize + (R + L) * itemsize),
        input_output_aliases=io_alias,
    )(x2d, drop_col, band_row)
    return out2d.reshape(B, C, H, W)


def band_dropout_reference(x, key, p=0.2, drop_prob=0.5):
    """Pure-JAX reference mirroring the PyTorch forward."""
    B, C = x.shape[0], x.shape[1]
    k_drop, k_band = jax.random.split(key)
    drop_mask = jax.random.uniform(k_drop, (B, 1, 1, 1)) < drop_prob
    band_mask = (jax.random.uniform(k_band, (C, 1, 1)) > p).astype(jnp.float32)
    return (x * (drop_mask * band_mask + (~drop_mask))).astype(x.dtype)


if __name__ == "__main__":
    key = jax.random.PRNGKey(0)
    k_x, k_mask = jax.random.split(key)

    # 1) Primary shape: H*W = 256 (128-multiple) -> lane-dense column path.
    B, C, H, W = 2, 4, 16, 16
    x = jax.random.normal(k_x, (B, C, H, W), dtype=jnp.float32)
    out = jax.block_until_ready(
        band_dropout_forward(x, k_mask, p=0.2, drop_prob=0.5, training=True))
    ref = band_dropout_reference(x, k_mask, p=0.2, drop_prob=0.5)
    assert out.shape == x.shape and out.dtype == x.dtype
    assert jnp.allclose(out, ref, atol=1e-6, rtol=1e-6), "mismatch (col path)"

    # 2) H*W = 49 (not a 128-multiple) but C*H*W = 6272 -> lane-dense row path.
    x2 = jax.random.normal(k_x, (2, 128, 7, 7), dtype=jnp.float32)
    out2 = jax.block_until_ready(band_dropout_forward(x2, k_mask))
    ref2 = band_dropout_reference(x2, k_mask)
    assert jnp.allclose(out2, ref2, atol=1e-6, rtol=1e-6), "mismatch (row path)"

    # 3) Neither H*W nor C*H*W a 128-multiple -> full-extent fallback path.
    x3 = jax.random.normal(k_x, (2, 3, 7, 7), dtype=jnp.float32)
    out3 = jax.block_until_ready(band_dropout_forward(x3, k_mask))
    ref3 = band_dropout_reference(x3, k_mask)
    assert jnp.allclose(out3, ref3, atol=1e-6, rtol=1e-6), "mismatch (fallback)"

    # 4) bf16 input (min sublane 16) — exercises dtype-aware tile rounding.
    x4 = jax.random.normal(k_x, (2, 16, 16, 16), dtype=jnp.float32).astype(jnp.bfloat16)
    out4 = jax.block_until_ready(band_dropout_forward(x4, k_mask))
    ref4 = band_dropout_reference(x4, k_mask)
    assert out4.dtype == jnp.bfloat16
    assert jnp.allclose(out4.astype(jnp.float32), ref4.astype(jnp.float32),
                        atol=1e-2, rtol=1e-2), "mismatch (bf16)"

    # 5) eval-mode path is a no-op passthrough (no kernel needed).
    out_eval = band_dropout_forward(x, k_mask, training=False)
    assert jnp.array_equal(out_eval, x)

    print("KERNEL_OK")
</pallas_src>

<mosaic_0001>
module attributes {stable_mosaic.version = 11 : i64} {
  func.func @_band_dropout_col_kernel(%arg0: i32, %arg1: i32, %arg2: memref<8x256xf32, #tpu.memory_space<vmem>>, %arg3: memref<8x1xf32, #tpu.memory_space<vmem>>, %arg4: memref<8x256xf32, #tpu.memory_space<vmem>>) attributes {dimension_semantics = [#tpu.dimension_semantics<parallel>, #tpu.dimension_semantics<parallel>], iteration_bounds = array<i64: 1, 1>, scalar_prefetch = 0 : i64, scratch_operands = 0 : i64, tpu.core_type = #tpu.core_type<tc>, window_params = [{transform_indices = @transform_0, window_bounds = array<i64: 8, 256>}, {transform_indices = @transform_1, window_bounds = array<i64: 8, 1>}, {transform_indices = @transform_2, window_bounds = array<i64: 8, 256>}]} {
    %c0 = arith.constant 0 : index
    %c0_0 = arith.constant 0 : index
    %0 = vector.load %arg2[%c0, %c0_0] : memref<8x256xf32, #tpu.memory_space<vmem>>, vector<8x256xf32>
    %c0_1 = arith.constant 0 : index
    %c0_2 = arith.constant 0 : index
    %1 = vector.load %arg3[%c0_1, %c0_2] : memref<8x1xf32, #tpu.memory_space<vmem>>, vector<8x1xf32>
    %2 = vector.broadcast %1 : vector<8x1xf32> to vector<8x256xf32>
    %3 = arith.mulf %0, %2 : vector<8x256xf32>
    %c0_3 = arith.constant 0 : index
    %c0_4 = arith.constant 0 : index
    %4 = vector.load %arg4[%c0_3, %c0_4] : memref<8x256xf32, #tpu.memory_space<vmem>>, vector<8x256xf32>
    tpu.vector_store %arg4[%c0_3, %c0_4], %3 {strides = array<i32>} : memref<8x256xf32, #tpu.memory_space<vmem>>, vector<8x256xf32>,
    return
  }
  func.func @transform_0(%arg0: i32, %arg1: i32) -> (i32, i32) {
    %c0_i32 = arith.constant 0 : i32
    return %arg0, %arg1 : i32, i32
  }
  func.func @transform_1(%arg0: i32, %arg1: i32) -> (i32, i32) {
    %c0_i32 = arith.constant 0 : i32
    %c0_i32_0 = arith.constant 0 : i32
    return %arg0, %c0_i32 : i32, i32
  }
  func.func @transform_2(%arg0: i32, %arg1: i32) -> (i32, i32) {
    %c0_i32 = arith.constant 0 : i32
    return %arg0, %arg1 : i32, i32
  }
}

</mosaic_0001>

<llo_original>
// kernel: tpu_custom_call.1
$region0: #{tpu_custom_call.1}
  #allocation0 [shape = 'u32[]', space=smem, size = 0x4, offset = 0x4, fixed_abs, tag = 'smem constant byte address 0x4 - core index']
  #allocation1 [shape = 'u32[144,128]{1,0:T(1,128)}', space=vmem, size = 0x12000, scoped, tag = 'internal scratch']
  %s0 = inlined_call_operand.hbm [shape: f32[8,256], index: 0, kind: input, shape index: {}]
  %s1 = inlined_call_operand.vmem [shape: f32[8,1], index: 1, kind: input, shape index: {}]
  %s2 = inlined_call_operand.hbm [shape: f32[8,256], index: 2, kind: output, shape index: {}]
  %s3 = sld [smem:[#allocation0]]
  $region22: #{tpu_custom_call.1} parent=0
    _
  %s5 = ssub.s32 1, %s3
  %s6 = scalar_select 0, %s5, %s3
  $region1: #{tpu_custom_call.1} parent=0
    #allocation2 [shape = 'u8[8192]{0}', space=vmem, size = 0x2000, scoped, tag = 'input window, operand 0, single buffered']
    #allocation3 [shape = 's32[1]{0}', space=sflag, size = 0x4, scoped, tag = 'scoped memory for tpu_custom_call.1']
    #allocation4 [shape = 's32[1]{0}', space=sflag, size = 0x4, scoped, tag = 'scoped memory for tpu_custom_call.1']
    #allocation5 [shape = 'u8[8192]{0}', space=vmem, size = 0x2000, scoped, tag = 'output window, operand 0, single buffered']
    %7 = vsyncpa [#allocation3], 0
    %8 = vsyncpa [#allocation4], 0
    // Predicated region
    $region2: #{tpu_custom_call.1} parent=1 // pred_check
      _
    $region3: #{tpu_custom_call.1} parent=1 // pred_check_branch
      %10 = sbr.rel (0) target = $region5
    $region4: #{tpu_custom_call.1} parent=1 // pred_region
      %s12 = ssub.s32 256, 256
      %13 = vsyncadd [#allocation3], %s12
      %s15 = sshll.u32 [#allocation2], 4
      %s16 = int_to_ptr.vmem [resolvable:$true] %s15
      %18 = dma.hbm_to_vmem [thread:$0]  %s0, 256, %s16, [#allocation3]
    $region5: #{tpu_custom_call.1} parent=1 // pred_fallthru
      _
    // Predicated region
    $region6: #{tpu_custom_call.1} parent=1 // pred_check
      _
    $region7: #{tpu_custom_call.1} parent=1 // pred_check_branch
      %20 = sbr.rel (0) target = $region9
    $region8: #{tpu_custom_call.1} parent=1 // pred_region
      _
    $region9: #{tpu_custom_call.1} parent=1 // pred_fallthru
      _
    // Predicated region
    $region10: #{tpu_custom_call.1} parent=1 // pred_check
      _
    $region11: #{tpu_custom_call.1} parent=1 // pred_check_branch
      %22 = sbr.rel (0) target = $region13
    $region12: #{tpu_custom_call.1} parent=1 // pred_region
      %23 = dma.done [#allocation3], 256
    $region13: #{tpu_custom_call.1} parent=1 // pred_fallthru
      _
    %v24 = vld [vmem:[#allocation2] sm:$0xff]
    %v25 = vld [vmem:[#allocation2 + $0x8] sm:$0xff]
    %v26 = vld [vmem:[%s1] sm:$0xff]
    %28 = vset.pattern.permute.xlu0 0
    %29 = vperm.xlu0 %28, %v26
    %v30 = vpop.permute.xlu0 %29
    %v32 = vmul.f32 %v24, %v30
    %v33 = vmul.f32 %v25, %v30
    %34 = vst [vmem:[#allocation5] sm:$0xff] %v32
    %35 = vst [vmem:[#allocation5 + $0x8] sm:$0xff] %v33
    // Predicated region
    $region14: #{tpu_custom_call.1} parent=1 // pred_check
      _
    $region15: #{tpu_custom_call.1} parent=1 // pred_check_branch
      %37 = sbr.rel (0) target = $region17
    $region16: #{tpu_custom_call.1} parent=1 // pred_region
      %s39 = ssub.s32 256, 256
      %40 = vsyncadd [#allocation4], %s39
      %s42 = sshll.u32 [#allocation5], 4
      %s43 = int_to_ptr.vmem [resolvable:$true] %s42
      %45 = dma.vmem_to_hbm [thread:$0]  %s43, 256, %s2, [#allocation4]
    $region17: #{tpu_custom_call.1} parent=1 // pred_fallthru
      _
    // Predicated region
    $region18: #{tpu_custom_call.1} parent=1 // pred_check
      _
    $region19: #{tpu_custom_call.1} parent=1 // pred_check_branch
      %47 = sbr.rel (0) target = $region21
    $region20: #{tpu_custom_call.1} parent=1 // pred_region
      %48 = dma.done [#allocation4], 256
    $region21: #{tpu_custom_call.1} parent=1 // pred_fallthru
      _
    %49 = vsyncpa [#allocation3], 1
    %50 = vsyncpa [#allocation4], 1

</llo_original>
